<compile_context>
chip_gen: v5e
topology: v5e:2x2
jax: 0.10.0
libtpu: 0.0.40
codegen_flags: <defaults>
</compile_context>

<pallas_src>
import jax
import jax.numpy as jnp
from jax.experimental import pallas as pl
from jax.experimental.pallas import tpu as pltpu

EMBEDDING_DIM = 200
E_PAD = 256              # contraction dim padded to a lane/sublane-aligned size
N_CLASSES = 2
HIDDEN_DIM = 64


def rnn_kernel(len_ref, x_ref, wih_ref, b_ref, whh_ref, wfc_ref, bfc_ref, out_ref):
    """Fused: input projection (one big MXU matmul) + unrolled recurrence +
    FC head + log_softmax. Single invocation, everything resident in VMEM."""
    B = out_ref.shape[0]
    TB = x_ref.shape[0]
    T = TB // B
    H = whh_ref.shape[0]

    # ---- Input projection, hoisted out of the serial chain -----------------
    # (T*B, E_PAD) bf16 @ (E_PAD, H) bf16 -> (T*B, H) f32 in one MXU matmul,
    # with the pre-summed bias (b_ih + b_hh) folded in.
    xw = jnp.dot(x_ref[...], wih_ref[...],
                 preferred_element_type=jnp.float32) + b_ref[...]   # (T*B, H) f32

    # ---- Hoisted packed-sequence mask: one compare, not T ------------------
    t_iota = jax.lax.broadcasted_iota(jnp.int32, (T, B, H), 0)
    valid = t_iota < len_ref[...].reshape(1, B, 1)                  # (T, B, H) bool

    whh = whh_ref[...]                                              # (H, H) bf16

    # ---- Serial recurrence: bf16 MXU operands, f32 state/tanh/select -------
    # Fully unrolled (T is static & small) so steps can overlap MXU/EUP latency.
    # TODO(synk): for large T switch to lax.fori_loop(unroll=k) reading xw from
    # a VMEM scratch via pl.ds to keep vreg pressure flat.
    h = jnp.zeros((B, H), jnp.float32)
    for t in range(T):
        x_t = xw[t * B:(t + 1) * B]                                 # (B, H) static slice
        hw = jnp.dot(h.astype(jnp.bfloat16), whh,                   # single bf16 MXU pass
                     preferred_element_type=jnp.float32)
        # packed-sequence semantics: freeze h once t >= length[b]
        h = jnp.where(valid[t], jnp.tanh(x_t + hw), h)

    # ---- FC head + log_softmax (executed exactly once) ---------------------
    logits = jnp.dot(h, wfc_ref[...],
                     preferred_element_type=jnp.float32) + bfc_ref[...]  # (B, C)
    m = jnp.max(logits, axis=1, keepdims=True)
    lse = jnp.log(jnp.sum(jnp.exp(logits - m), axis=1, keepdims=True)) + m
    out_ref[...] = logits - lse


def rnn_forward(token_ids, lengths, params):
    """token_ids: (T, B) int32; lengths: (B,) int32 -> (B, N_CLASSES) f32."""
    T, B = token_ids.shape
    H, C = HIDDEN_DIM, N_CLASSES

    # Embedding table: zero-pad E -> E_PAD and cast to bf16 once, so the gather
    # yields padded bf16 activations directly (no f32 materialization / cast).
    emb_tbl = jnp.pad(params["embedding"],
                      ((0, 0), (0, E_PAD - EMBEDDING_DIM))).astype(jnp.bfloat16)
    x2 = jnp.take(emb_tbl, token_ids, axis=0).reshape(T * B, E_PAD)     # bf16

    wih = jnp.pad(params["w_ih"],
                  ((0, E_PAD - EMBEDDING_DIM), (0, 0))).astype(jnp.bfloat16)
    whh = params["w_hh"].astype(jnp.bfloat16)           # bf16 recurrence operand
    # Pre-sum the two RNN biases once outside the kernel.
    b_sum = (params["b_ih"] + params["b_hh"]).astype(jnp.float32)       # (1, H)
    lengths_i32 = lengths.astype(jnp.int32).reshape(B, 1)               # (B, 1)

    inputs = (lengths_i32, x2, wih, b_sum, whh, params["w_fc"], params["b_fc"])
    vmem = pl.BlockSpec(memory_space=pltpu.MemorySpace.VMEM)

    flops = 2 * T * B * E_PAD * H + T * 2 * B * H * H + 2 * B * H * C
    transcendentals = T * B * H + B * C
    bytes_accessed = sum(int(a.size) * a.dtype.itemsize for a in inputs) + B * C * 4

    # TODO(synk): for large batches, add grid=(B // tile,) over batch tiles with
    # dimension_semantics=("parallel",) so v7x's two TensorCores split the work.
    return pl.pallas_call(
        rnn_kernel,
        out_shape=jax.ShapeDtypeStruct((B, C), jnp.float32),
        in_specs=[vmem] * len(inputs),
        out_specs=vmem,
        cost_estimate=pl.CostEstimate(flops=flops,
                                      transcendentals=transcendentals,
                                      bytes_accessed=bytes_accessed),
    )(*inputs)


def rnn_reference(token_ids, lengths, params):
    """Pure-JAX f32 reference mirroring PyTorch packed nn.RNN + Linear + log_softmax."""
    T, B = token_ids.shape
    emb = jnp.take(params["embedding"], token_ids, axis=0)
    h = jnp.zeros((B, HIDDEN_DIM), jnp.float32)
    len_col = lengths.reshape(B, 1)
    for t in range(T):
        pre = (emb[t] @ params["w_ih"] + h @ params["w_hh"]
               + params["b_ih"] + params["b_hh"])
        h = jnp.where(len_col > t, jnp.tanh(pre), h)
    logits = h @ params["w_fc"] + params["b_fc"]
    return jax.nn.log_softmax(logits, axis=1)


def init_params(key, vocab_size):
    E, H, C = EMBEDDING_DIM, HIDDEN_DIM, N_CLASSES
    ks = jax.random.split(key, 8)
    s_rnn = 1.0 / jnp.sqrt(H)      # PyTorch nn.RNN init scale
    s_fc = 1.0 / jnp.sqrt(H)       # PyTorch nn.Linear init scale
    return {
        # synthetic deterministic "glove" table (stands in for from_pretrained)
        "embedding": jax.random.normal(ks[0], (vocab_size, E), jnp.float32),
        "w_ih": jax.random.uniform(ks[1], (E, H), jnp.float32, -s_rnn, s_rnn),
        "w_hh": jax.random.uniform(ks[2], (H, H), jnp.float32, -s_rnn, s_rnn),
        "b_ih": jax.random.uniform(ks[3], (1, H), jnp.float32, -s_rnn, s_rnn),
        "b_hh": jax.random.uniform(ks[4], (1, H), jnp.float32, -s_rnn, s_rnn),
        "w_fc": jax.random.uniform(ks[5], (H, C), jnp.float32, -s_fc, s_fc),
        "b_fc": jax.random.uniform(ks[6], (1, C), jnp.float32, -s_fc, s_fc),
    }


if __name__ == "__main__":
    key = jax.random.PRNGKey(0)
    VOCAB, T, B = 50, 8, 8

    k_ids, k_params = jax.random.split(key)
    token_ids = jax.random.randint(k_ids, (T, B), 0, VOCAB, dtype=jnp.int32)
    # lengths sorted descending (pack_padded_sequence default expects sorted)
    lengths = jnp.array([8, 8, 7, 6, 5, 4, 3, 2], dtype=jnp.int32)

    params = init_params(k_params, VOCAB)

    out = rnn_forward(token_ids, lengths, params)
    out = jax.block_until_ready(out)
    ref = rnn_reference(token_ids, lengths, params)

    assert out.shape == (B, N_CLASSES)
    assert bool(jnp.all(jnp.isfinite(out)))
    # bf16 embedding gather + bf16 projection + bf16 recurrence operands vs f32
    # reference -> loosened tolerance (re-validate if T grows much larger).
    assert bool(jnp.allclose(out, ref, atol=5e-2)), "mismatch vs pure-JAX reference"
    print("KERNEL_OK")
</pallas_src>

<mosaic_0001>
module attributes {stable_mosaic.version = 11 : i64} {
  func.func @rnn_kernel(%arg0: memref<8x1xi32, #tpu.memory_space<vmem>>, %arg1: memref<64x256xbf16, #tpu.memory_space<vmem>>, %arg2: memref<256x64xbf16, #tpu.memory_space<vmem>>, %arg3: memref<1x64xf32, #tpu.memory_space<vmem>>, %arg4: memref<64x64xbf16, #tpu.memory_space<vmem>>, %arg5: memref<64x2xf32, #tpu.memory_space<vmem>>, %arg6: memref<1x2xf32, #tpu.memory_space<vmem>>, %arg7: memref<8x2xf32, #tpu.memory_space<vmem>>) attributes {dimension_semantics = [], scalar_prefetch = 0 : i64, scratch_operands = 0 : i64, tpu.core_type = #tpu.core_type<tc>} {
    %c0 = arith.constant 0 : index
    %c0_0 = arith.constant 0 : index
    %0 = vector.load %arg1[%c0, %c0_0] : memref<64x256xbf16, #tpu.memory_space<vmem>>, vector<64x256xbf16>
    %c0_1 = arith.constant 0 : index
    %c0_2 = arith.constant 0 : index
    %1 = vector.load %arg2[%c0_1, %c0_2] : memref<256x64xbf16, #tpu.memory_space<vmem>>, vector<256x64xbf16>
    %cst = arith.constant dense<0.000000e+00> : vector<64x64xf32>
    %2 = tpu.matmul %0, %1, %cst {dimension_numbers = #tpu.dot_dimension_numbers<[1], [0], [0], [1], [0, 0, 1, 1], [], []>} : vector<64x256xbf16>, vector<256x64xbf16>, vector<64x64xf32> -> vector<64x64xf32>
    %c0_3 = arith.constant 0 : index
    %c0_4 = arith.constant 0 : index
    %3 = vector.load %arg3[%c0_3, %c0_4] : memref<1x64xf32, #tpu.memory_space<vmem>>, vector<1x64xf32>
    %4 = vector.broadcast %3 : vector<1x64xf32> to vector<64x64xf32>
    %5 = arith.addf %2, %4 : vector<64x64xf32>
    %6 = tpu.iota {dimensions = array<i32: 0>} : vector<8x8x64xi32>
    %c0_5 = arith.constant 0 : index
    %c0_6 = arith.constant 0 : index
    %7 = vector.load %arg0[%c0_5, %c0_6] : memref<8x1xi32, #tpu.memory_space<vmem>>, vector<8x1xi32>
    %8 = vector.shape_cast %7 : vector<8x1xi32> to vector<1x8x1xi32>
    %9 = vector.broadcast %8 : vector<1x8x1xi32> to vector<8x8x64xi32>
    %10 = arith.cmpi slt, %6, %9 : vector<8x8x64xi32>
    %c0_7 = arith.constant 0 : index
    %c0_8 = arith.constant 0 : index
    %11 = vector.load %arg4[%c0_7, %c0_8] : memref<64x64xbf16, #tpu.memory_space<vmem>>, vector<64x64xbf16>
    %cst_9 = arith.constant 0.000000e+00 : f32
    %12 = vector.broadcast %cst_9 : f32 to vector<8x64xf32>
    %13 = vector.extract_strided_slice %5 {offsets = [0, 0], sizes = [8, 64], strides = [1, 1]} : vector<64x64xf32> to vector<8x64xf32>
    %14 = arith.truncf %12 : vector<8x64xf32> to vector<8x64xbf16>
    %cst_10 = arith.constant dense<0.000000e+00> : vector<8x64xf32>
    %15 = tpu.matmul %14, %11, %cst_10 {dimension_numbers = #tpu.dot_dimension_numbers<[1], [0], [0], [1], [0, 0, 1, 1], [], []>} : vector<8x64xbf16>, vector<64x64xbf16>, vector<8x64xf32> -> vector<8x64xf32>
    %16 = vector.extract_strided_slice %10 {offsets = [0, 0, 0], sizes = [1, 8, 64], strides = [1, 1, 1]} : vector<8x8x64xi1> to vector<1x8x64xi1>
    %17 = vector.shape_cast %16 : vector<1x8x64xi1> to vector<8x64xi1>
    %18 = arith.addf %13, %15 : vector<8x64xf32>
    %19 = math.tanh %18 : vector<8x64xf32>
    %20 = arith.select %17, %19, %12 : vector<8x64xi1>, vector<8x64xf32>
    %21 = vector.extract_strided_slice %5 {offsets = [8, 0], sizes = [8, 64], strides = [1, 1]} : vector<64x64xf32> to vector<8x64xf32>
    %22 = arith.truncf %20 : vector<8x64xf32> to vector<8x64xbf16>
    %cst_11 = arith.constant dense<0.000000e+00> : vector<8x64xf32>
    %23 = tpu.matmul %22, %11, %cst_11 {dimension_numbers = #tpu.dot_dimension_numbers<[1], [0], [0], [1], [0, 0, 1, 1], [], []>} : vector<8x64xbf16>, vector<64x64xbf16>, vector<8x64xf32> -> vector<8x64xf32>
    %24 = vector.extract_strided_slice %10 {offsets = [1, 0, 0], sizes = [1, 8, 64], strides = [1, 1, 1]} : vector<8x8x64xi1> to vector<1x8x64xi1>
    %25 = vector.shape_cast %24 : vector<1x8x64xi1> to vector<8x64xi1>
    %26 = arith.addf %21, %23 : vector<8x64xf32>
    %27 = math.tanh %26 : vector<8x64xf32>
    %28 = arith.select %25, %27, %20 : vector<8x64xi1>, vector<8x64xf32>
    %29 = vector.extract_strided_slice %5 {offsets = [16, 0], sizes = [8, 64], strides = [1, 1]} : vector<64x64xf32> to vector<8x64xf32>
    %30 = arith.truncf %28 : vector<8x64xf32> to vector<8x64xbf16>
    %cst_12 = arith.constant dense<0.000000e+00> : vector<8x64xf32>
    %31 = tpu.matmul %30, %11, %cst_12 {dimension_numbers = #tpu.dot_dimension_numbers<[1], [0], [0], [1], [0, 0, 1, 1], [], []>} : vector<8x64xbf16>, vector<64x64xbf16>, vector<8x64xf32> -> vector<8x64xf32>
    %32 = vector.extract_strided_slice %10 {offsets = [2, 0, 0], sizes = [1, 8, 64], strides = [1, 1, 1]} : vector<8x8x64xi1> to vector<1x8x64xi1>
    %33 = vector.shape_cast %32 : vector<1x8x64xi1> to vector<8x64xi1>
    %34 = arith.addf %29, %31 : vector<8x64xf32>
    %35 = math.tanh %34 : vector<8x64xf32>
    %36 = arith.select %33, %35, %28 : vector<8x64xi1>, vector<8x64xf32>
    %37 = vector.extract_strided_slice %5 {offsets = [24, 0], sizes = [8, 64], strides = [1, 1]} : vector<64x64xf32> to vector<8x64xf32>
    %38 = arith.truncf %36 : vector<8x64xf32> to vector<8x64xbf16>
    %cst_13 = arith.constant dense<0.000000e+00> : vector<8x64xf32>
    %39 = tpu.matmul %38, %11, %cst_13 {dimension_numbers = #tpu.dot_dimension_numbers<[1], [0], [0], [1], [0, 0, 1, 1], [], []>} : vector<8x64xbf16>, vector<64x64xbf16>, vector<8x64xf32> -> vector<8x64xf32>
    %40 = vector.extract_strided_slice %10 {offsets = [3, 0, 0], sizes = [1, 8, 64], strides = [1, 1, 1]} : vector<8x8x64xi1> to vector<1x8x64xi1>
    %41 = vector.shape_cast %40 : vector<1x8x64xi1> to vector<8x64xi1>
    %42 = arith.addf %37, %39 : vector<8x64xf32>
    %43 = math.tanh %42 : vector<8x64xf32>
    %44 = arith.select %41, %43, %36 : vector<8x64xi1>, vector<8x64xf32>
    %45 = vector.extract_strided_slice %5 {offsets = [32, 0], sizes = [8, 64], strides = [1, 1]} : vector<64x64xf32> to vector<8x64xf32>
    %46 = arith.truncf %44 : vector<8x64xf32> to vector<8x64xbf16>
    %cst_14 = arith.constant dense<0.000000e+00> : vector<8x64xf32>
    %47 = tpu.matmul %46, %11, %cst_14 {dimension_numbers = #tpu.dot_dimension_numbers<[1], [0], [0], [1], [0, 0, 1, 1], [], []>} : vector<8x64xbf16>, vector<64x64xbf16>, vector<8x64xf32> -> vector<8x64xf32>
    %48 = vector.extract_strided_slice %10 {offsets = [4, 0, 0], sizes = [1, 8, 64], strides = [1, 1, 1]} : vector<8x8x64xi1> to vector<1x8x64xi1>
    %49 = vector.shape_cast %48 : vector<1x8x64xi1> to vector<8x64xi1>
    %50 = arith.addf %45, %47 : vector<8x64xf32>
    %51 = math.tanh %50 : vector<8x64xf32>
    %52 = arith.select %49, %51, %44 : vector<8x64xi1>, vector<8x64xf32>
    %53 = vector.extract_strided_slice %5 {offsets = [40, 0], sizes = [8, 64], strides = [1, 1]} : vector<64x64xf32> to vector<8x64xf32>
    %54 = arith.truncf %52 : vector<8x64xf32> to vector<8x64xbf16>
    %cst_15 = arith.constant dense<0.000000e+00> : vector<8x64xf32>
    %55 = tpu.matmul %54, %11, %cst_15 {dimension_numbers = #tpu.dot_dimension_numbers<[1], [0], [0], [1], [0, 0, 1, 1], [], []>} : vector<8x64xbf16>, vector<64x64xbf16>, vector<8x64xf32> -> vector<8x64xf32>
    %56 = vector.extract_strided_slice %10 {offsets = [5, 0, 0], sizes = [1, 8, 64], strides = [1, 1, 1]} : vector<8x8x64xi1> to vector<1x8x64xi1>
    %57 = vector.shape_cast %56 : vector<1x8x64xi1> to vector<8x64xi1>
    %58 = arith.addf %53, %55 : vector<8x64xf32>
    %59 = math.tanh %58 : vector<8x64xf32>
    %60 = arith.select %57, %59, %52 : vector<8x64xi1>, vector<8x64xf32>
    %61 = vector.extract_strided_slice %5 {offsets = [48, 0], sizes = [8, 64], strides = [1, 1]} : vector<64x64xf32> to vector<8x64xf32>
    %62 = arith.truncf %60 : vector<8x64xf32> to vector<8x64xbf16>
    %cst_16 = arith.constant dense<0.000000e+00> : vector<8x64xf32>
    %63 = tpu.matmul %62, %11, %cst_16 {dimension_numbers = #tpu.dot_dimension_numbers<[1], [0], [0], [1], [0, 0, 1, 1], [], []>} : vector<8x64xbf16>, vector<64x64xbf16>, vector<8x64xf32> -> vector<8x64xf32>
    %64 = vector.extract_strided_slice %10 {offsets = [6, 0, 0], sizes = [1, 8, 64], strides = [1, 1, 1]} : vector<8x8x64xi1> to vector<1x8x64xi1>
    %65 = vector.shape_cast %64 : vector<1x8x64xi1> to vector<8x64xi1>
    %66 = arith.addf %61, %63 : vector<8x64xf32>
    %67 = math.tanh %66 : vector<8x64xf32>
    %68 = arith.select %65, %67, %60 : vector<8x64xi1>, vector<8x64xf32>
    %69 = vector.extract_strided_slice %5 {offsets = [56, 0], sizes = [8, 64], strides = [1, 1]} : vector<64x64xf32> to vector<8x64xf32>
    %70 = arith.truncf %68 : vector<8x64xf32> to vector<8x64xbf16>
    %cst_17 = arith.constant dense<0.000000e+00> : vector<8x64xf32>
    %71 = tpu.matmul %70, %11, %cst_17 {dimension_numbers = #tpu.dot_dimension_numbers<[1], [0], [0], [1], [0, 0, 1, 1], [], []>} : vector<8x64xbf16>, vector<64x64xbf16>, vector<8x64xf32> -> vector<8x64xf32>
    %72 = vector.extract_strided_slice %10 {offsets = [7, 0, 0], sizes = [1, 8, 64], strides = [1, 1, 1]} : vector<8x8x64xi1> to vector<1x8x64xi1>
    %73 = vector.shape_cast %72 : vector<1x8x64xi1> to vector<8x64xi1>
    %74 = arith.addf %69, %71 : vector<8x64xf32>
    %75 = math.tanh %74 : vector<8x64xf32>
    %76 = arith.select %73, %75, %68 : vector<8x64xi1>, vector<8x64xf32>
    %c0_18 = arith.constant 0 : index
    %c0_19 = arith.constant 0 : index
    %77 = vector.load %arg5[%c0_18, %c0_19] : memref<64x2xf32, #tpu.memory_space<vmem>>, vector<64x2xf32>
    %cst_20 = arith.constant dense<0.000000e+00> : vector<8x2xf32>
    %78 = tpu.matmul %76, %77, %cst_20 {dimension_numbers = #tpu.dot_dimension_numbers<[1], [0], [0], [1], [0, 0, 1, 1], [], []>} : vector<8x64xf32>, vector<64x2xf32>, vector<8x2xf32> -> vector<8x2xf32>
    %c0_21 = arith.constant 0 : index
    %c0_22 = arith.constant 0 : index
    %79 = vector.load %arg6[%c0_21, %c0_22] : memref<1x2xf32, #tpu.memory_space<vmem>>, vector<1x2xf32>
    %80 = vector.broadcast %79 : vector<1x2xf32> to vector<8x2xf32>
    %81 = arith.addf %78, %80 : vector<8x2xf32>
    %cst_23 = arith.constant dense<0xFF800000> : vector<8xf32>
    %82 = vector.multi_reduction <maximumf>, %81, %cst_23 [1] : vector<8x2xf32> to vector<8xf32>
    %83 = vector.shape_cast %82 : vector<8xf32> to vector<8x1xf32>
    %84 = vector.broadcast %83 : vector<8x1xf32> to vector<8x2xf32>
    %85 = arith.subf %81, %84 : vector<8x2xf32>
    %86 = math.exp %85 : vector<8x2xf32>
    %cst_24 = arith.constant dense<0.000000e+00> : vector<8xf32>
    %87 = vector.multi_reduction <add>, %86, %cst_24 [1] : vector<8x2xf32> to vector<8xf32>
    %88 = vector.shape_cast %87 : vector<8xf32> to vector<8x1xf32>
    %89 = math.log %88 : vector<8x1xf32>
    %90 = arith.addf %89, %83 : vector<8x1xf32>
    %91 = vector.broadcast %90 : vector<8x1xf32> to vector<8x2xf32>
    %92 = arith.subf %81, %91 : vector<8x2xf32>
    %c0_25 = arith.constant 0 : index
    %c0_26 = arith.constant 0 : index
    %93 = vector.load %arg7[%c0_25, %c0_26] : memref<8x2xf32, #tpu.memory_space<vmem>>, vector<8x2xf32>
    tpu.vector_store %arg7[%c0_25, %c0_26], %92 {strides = array<i32>} : memref<8x2xf32, #tpu.memory_space<vmem>>, vector<8x2xf32>,
    return
  }
}

</mosaic_0001>

<llo_original>
// kernel: tpu_custom_call.1
$region0: #{tpu_custom_call.1}
  #allocation0 [shape = 'u32[]', space=smem, size = 0x4, offset = 0x4, fixed_abs, tag = 'smem constant byte address 0x4 - core index']
  #allocation1 [shape = 'u32[72,128]{1,0:T(1,128)}', space=vmem, size = 0x9000, scoped, tag = 'internal scratch']
  %s0 = inlined_call_operand.vmem [shape: s32[8,1], index: 0, kind: input, shape index: {}]
  %s1 = inlined_call_operand.vmem [shape: bf16[64,256], index: 1, kind: input, shape index: {}]
  %s2 = inlined_call_operand.vmem [shape: bf16[256,64], index: 2, kind: input, shape index: {}]
  %s3 = inlined_call_operand.vmem [shape: f32[1,64], index: 3, kind: input, shape index: {}]
  %s4 = inlined_call_operand.vmem [shape: bf16[64,64], index: 4, kind: input, shape index: {}]
  %s5 = inlined_call_operand.vmem [shape: f32[64,2], index: 5, kind: input, shape index: {}]
  %s6 = inlined_call_operand.vmem [shape: f32[1,2], index: 6, kind: input, shape index: {}]
  %s7 = inlined_call_operand.vmem [shape: f32[8,2], index: 7, kind: output, shape index: {}]
  %s8 = sld [smem:[#allocation0]]
  $region38: #{tpu_custom_call.1} parent=0
    _
  %s10 = ssub.s32 1, %s8
  %s11 = scalar_select 0, %s10, %s8
  // Predicated region
  $region2: #{tpu_custom_call.1} parent=0 // pred_check
    _
  $region3: #{tpu_custom_call.1} parent=0 // pred_check_branch
    %13 = sbr.rel (0) target = $region5
  $region4: #{tpu_custom_call.1} parent=0 // pred_region
    _
  $region5: #{tpu_custom_call.1} parent=0 // pred_fallthru
    _
  // Predicated region
  $region6: #{tpu_custom_call.1} parent=0 // pred_check
    _
  $region7: #{tpu_custom_call.1} parent=0 // pred_check_branch
    %15 = sbr.rel (0) target = $region9
  $region8: #{tpu_custom_call.1} parent=0 // pred_region
    _
  $region9: #{tpu_custom_call.1} parent=0 // pred_fallthru
    _
  // Predicated region
  $region10: #{tpu_custom_call.1} parent=0 // pred_check
    _
  $region11: #{tpu_custom_call.1} parent=0 // pred_check_branch
    %17 = sbr.rel (0) target = $region13
  $region12: #{tpu_custom_call.1} parent=0 // pred_region
    _
  $region13: #{tpu_custom_call.1} parent=0 // pred_fallthru
    _
  // Predicated region
  $region14: #{tpu_custom_call.1} parent=0 // pred_check
    _
  $region15: #{tpu_custom_call.1} parent=0 // pred_check_branch
    %19 = sbr.rel (0) target = $region17
  $region16: #{tpu_custom_call.1} parent=0 // pred_region
    _
  $region17: #{tpu_custom_call.1} parent=0 // pred_fallthru
    _
  // Predicated region
  $region18: #{tpu_custom_call.1} parent=0 // pred_check
    _
  $region19: #{tpu_custom_call.1} parent=0 // pred_check_branch
    %21 = sbr.rel (0) target = $region21
  $region20: #{tpu_custom_call.1} parent=0 // pred_region
    _
  $region21: #{tpu_custom_call.1} parent=0 // pred_fallthru
    _
  // Predicated region
  $region22: #{tpu_custom_call.1} parent=0 // pred_check
    _
  $region23: #{tpu_custom_call.1} parent=0 // pred_check_branch
    %23 = sbr.rel (0) target = $region25
  $region24: #{tpu_custom_call.1} parent=0 // pred_region
    _
  $region25: #{tpu_custom_call.1} parent=0 // pred_fallthru
    _
  // Predicated region
  $region26: #{tpu_custom_call.1} parent=0 // pred_check
    _
  $region27: #{tpu_custom_call.1} parent=0 // pred_check_branch
    %25 = sbr.rel (0) target = $region29
  $region28: #{tpu_custom_call.1} parent=0 // pred_region
    _
  $region29: #{tpu_custom_call.1} parent=0 // pred_fallthru
    _
  %v27 = vld [vmem:[%s1] sm:$0xff]
  %v28 = vld [vmem:[%s1 + $0x8] sm:$0xff]
  %v29 = vld [vmem:[%s1 + $0x10] sm:$0xff]
  %v30 = vld [vmem:[%s1 + $0x18] sm:$0xff]
  %v31 = vld [vmem:[%s1 + $0x20] sm:$0xff]
  %v32 = vld [vmem:[%s1 + $0x28] sm:$0xff]
  %v33 = vld [vmem:[%s1 + $0x30] sm:$0xff]
  %v34 = vld [vmem:[%s1 + $0x38] sm:$0xff]
  %v35 = vld [vmem:[%s2] sm:$0xf]
  %v36 = vld [vmem:[%s2 + $0x4] sm:$0xf]
  %v37 = vld [vmem:[%s2 + $0x8] sm:$0xf]
  %v38 = vld [vmem:[%s2 + $0xc] sm:$0xf]
  %v39 = vld [vmem:[%s2 + $0x10] sm:$0xf]
  %v40 = vld [vmem:[%s2 + $0x14] sm:$0xf]
  %v41 = vld [vmem:[%s2 + $0x18] sm:$0xf]
  %v42 = vld [vmem:[%s2 + $0x1c] sm:$0xf]
  %v43 = vld [vmem:[%s2 + $0x20] sm:$0xf]
  %v44 = vld [vmem:[%s2 + $0x24] sm:$0xf]
  %v45 = vld [vmem:[%s2 + $0x28] sm:$0xf]
  %v46 = vld [vmem:[%s2 + $0x2c] sm:$0xf]
  %v47 = vld [vmem:[%s2 + $0x30] sm:$0xf]
  %v48 = vld [vmem:[%s2 + $0x34] sm:$0xf]
  %v49 = vld [vmem:[%s2 + $0x38] sm:$0xf]
  %v50 = vld [vmem:[%s2 + $0x3c] sm:$0xf]
  %v51 = vld [vmem:[%s2 + $0x40] sm:$0xf]
  %v52 = vld [vmem:[%s2 + $0x44] sm:$0xf]
  %v53 = vld [vmem:[%s2 + $0x48] sm:$0xf]
  %v54 = vld [vmem:[%s2 + $0x4c] sm:$0xf]
  %v55 = vld [vmem:[%s2 + $0x50] sm:$0xf]
  %v56 = vld [vmem:[%s2 + $0x54] sm:$0xf]
  %v57 = vld [vmem:[%s2 + $0x58] sm:$0xf]
  %v58 = vld [vmem:[%s2 + $0x5c] sm:$0xf]
  %v59 = vld [vmem:[%s2 + $0x60] sm:$0xf]
  %v60 = vld [vmem:[%s2 + $0x64] sm:$0xf]
  %v61 = vld [vmem:[%s2 + $0x68] sm:$0xf]
  %v62 = vld [vmem:[%s2 + $0x6c] sm:$0xf]
  %v63 = vld [vmem:[%s2 + $0x70] sm:$0xf]
  %v64 = vld [vmem:[%s2 + $0x74] sm:$0xf]
  %v65 = vld [vmem:[%s2 + $0x78] sm:$0xf]
  %v66 = vld [vmem:[%s2 + $0x7c] sm:$0xf]
  %v67 = vld [vmem:[%s3] sm:$0x1]
  %v69 = vperm.slane %v67, 0
  %v79 = vunpack.c.l.b16 %v27
  %v80 = vunpack.c.h.b16 %v27
  %v81 = vunpack.c.l.b16 %v28
  %v82 = vunpack.c.h.b16 %v28
  %v83 = vunpack.c.l.b16 %v29
  %v84 = vunpack.c.h.b16 %v29
  %v85 = vunpack.c.l.b16 %v30
  %v86 = vunpack.c.h.b16 %v30
  %v87 = vunpack.c.l.b16 %v31
  %v88 = vunpack.c.h.b16 %v31
  %v89 = vunpack.c.l.b16 %v32
  %v90 = vunpack.c.h.b16 %v32
  %v91 = vunpack.c.l.b16 %v33
  %v92 = vunpack.c.h.b16 %v33
  %v93 = vunpack.c.l.b16 %v34
  %v94 = vunpack.c.h.b16 %v34
  %v95 = vpack.c.b16 %v81, %v79
  %v96 = vpack.c.b16 %v82, %v80
  %v97 = vpack.c.b16 %v85, %v83
  %v98 = vpack.c.b16 %v86, %v84
  %v99 = vpack.c.b16 %v89, %v87
  %v100 = vpack.c.b16 %v90, %v88
  %v101 = vpack.c.b16 %v93, %v91
  %v102 = vpack.c.b16 %v94, %v92
  %v143 = vunpack.c.l.b16 %v35
  %v144 = vunpack.c.l.b16 %v36
  %v145 = vunpack.c.l.b16 %v37
  %v146 = vunpack.c.l.b16 %v38
  %v147 = vunpack.c.l.b16 %v39
  %v148 = vunpack.c.l.b16 %v40
  %v149 = vunpack.c.l.b16 %v41
  %v150 = vunpack.c.l.b16 %v42
  %v151 = vunpack.c.l.b16 %v43
  %v152 = vunpack.c.l.b16 %v44
  %v153 = vunpack.c.l.b16 %v45
  %v154 = vunpack.c.l.b16 %v46
  %v155 = vunpack.c.l.b16 %v47
  %v156 = vunpack.c.l.b16 %v48
  %v157 = vunpack.c.l.b16 %v49
  %v158 = vunpack.c.l.b16 %v50
  %v159 = vunpack.c.l.b16 %v51
  %v160 = vunpack.c.l.b16 %v52
  %v161 = vunpack.c.l.b16 %v53
  %v162 = vunpack.c.l.b16 %v54
  %v163 = vunpack.c.l.b16 %v55
  %v164 = vunpack.c.l.b16 %v56
  %v165 = vunpack.c.l.b16 %v57
  %v166 = vunpack.c.l.b16 %v58
  %v167 = vunpack.c.l.b16 %v59
  %v168 = vunpack.c.l.b16 %v60
  %v169 = vunpack.c.l.b16 %v61
  %v170 = vunpack.c.l.b16 %v62
  %v171 = vunpack.c.l.b16 %v63
  %v172 = vunpack.c.l.b16 %v64
  %v173 = vunpack.c.l.b16 %v65
  %v174 = vunpack.c.l.b16 %v66
  %v175 = vpack.c.b16 %v144, %v143
  %v176 = vpack.c.b16 %v146, %v145
  %v177 = vpack.c.b16 %v148, %v147
  %v178 = vpack.c.b16 %v150, %v149
  %v179 = vpack.c.b16 %v152, %v151
  %v180 = vpack.c.b16 %v154, %v153
  %v181 = vpack.c.b16 %v156, %v155
  %v182 = vpack.c.b16 %v158, %v157
  %v183 = vpack.c.b16 %v160, %v159
  %v184 = vpack.c.b16 %v162, %v161
  %v185 = vpack.c.b16 %v164, %v163
  %v186 = vpack.c.b16 %v166, %v165
  %v187 = vpack.c.b16 %v168, %v167
  %v188 = vpack.c.b16 %v170, %v169
  %v189 = vpack.c.b16 %v172, %v171
  %v190 = vpack.c.b16 %v174, %v173
  %207 = vmatpush.bf16.msra.mxu0 %v182
  %208 = vmatpush.bf16.msra.mxu0 %v181
  %209 = vmatpush.bf16.msra.mxu0 %v180
  %210 = vmatpush.bf16.msra.mxu0 %v179
  %211 = vmatpush.bf16.msra.mxu0 %v178
  %212 = vmatpush.bf16.msra.mxu0 %v177
  %213 = vmatpush.bf16.msra.mxu0 %v176
  %214 = vmatpush.bf16.msra.mxu0 %v175
  %215 = vmatmul.bf16.gmra.mxu0 %v95
  %v216 = vpop.f32.mrf.mxu0
  %v217 = vadd.f32 %v69, %v216
  %v218 = vpop.f32.mrf.mxu0
  %v219 = vadd.f32 %v69, %v218
  %220 = vmatmul.bf16.gmra.mxu0 %v97
  %v221 = vpop.f32.mrf.mxu0
  %v222 = vadd.f32 %v69, %v221
  %v223 = vpop.f32.mrf.mxu0
  %v224 = vadd.f32 %v69, %v223
  %225 = vmatmul.bf16.gmra.mxu0 %v99
  %v226 = vpop.f32.mrf.mxu0
  %v227 = vadd.f32 %v69, %v226
  %v228 = vpop.f32.mrf.mxu0
  %v229 = vadd.f32 %v69, %v228
  %230 = vmatmul.bf16.gmra.mxu0 %v101
  %v231 = vpop.f32.mrf.mxu0
  %v232 = vadd.f32 %v69, %v231
  %v233 = vpop.f32.mrf.mxu0
  %v234 = vadd.f32 %v69, %v233
  %235 = vdwg.mxu0
  %236 = vmatpush.bf16.msra.mxu0 %v190
  %237 = vmatpush.bf16.msra.mxu0 %v189
  %238 = vmatpush.bf16.msra.mxu0 %v188
  %239 = vmatpush.bf16.msra.mxu0 %v187
  %240 = vmatpush.bf16.msra.mxu0 %v186
  %241 = vmatpush.bf16.msra.mxu0 %v185
  %242 = vmatpush.bf16.msra.mxu0 %v184
  %243 = vmatpush.bf16.msra.mxu0 %v183
  %244 = vmatmul.bf16.gmra.mxu0 %v96
  %v245 = vpop.f32.mrf.mxu0
  %v246 = vadd.f32 %v217, %v245
  %v247 = vpop.f32.mrf.mxu0
  %v248 = vadd.f32 %v219, %v247
  %249 = vmatmul.bf16.gmra.mxu0 %v98
  %v250 = vpop.f32.mrf.mxu0
  %v251 = vadd.f32 %v222, %v250
  %v252 = vpop.f32.mrf.mxu0
  %v253 = vadd.f32 %v224, %v252
  %254 = vmatmul.bf16.gmra.mxu0 %v100
  %v255 = vpop.f32.mrf.mxu0
  %v256 = vadd.f32 %v227, %v255
  %v257 = vpop.f32.mrf.mxu0
  %v258 = vadd.f32 %v229, %v257
  %259 = vmatmul.bf16.gmra.mxu0 %v102
  %v260 = vpop.f32.mrf.mxu0
  %v261 = vadd.f32 %v232, %v260
  %v262 = vpop.f32.mrf.mxu0
  %v263 = vadd.f32 %v234, %v262
  %264 = vdwg.mxu0
  %v265 = vld [vmem:[%s0] sm:$0xff]
  %266 = vset.pattern.permute.xlu0 0
  %267 = vperm.xlu0 %266, %v265
  %v268 = vpop.permute.xlu0 %267
  %vm269 = vcmp.gt.s32.totalorder %v268, 0
  %vm270 = vcmp.gt.s32.totalorder %v268, 1
  %vm271 = vcmp.gt.s32.totalorder %v268, 2
  %vm272 = vcmp.gt.s32.totalorder %v268, 3
  %vm273 = vcmp.gt.s32.totalorder %v268, 4
  %vm274 = vcmp.gt.s32.totalorder %v268, 5
  %vm275 = vcmp.gt.s32.totalorder %v268, 6
  %vm276 = vcmp.gt.s32.totalorder %v268, 7
  %v277 = vld [vmem:[%s4] sm:$0xf]
  %v278 = vld [vmem:[%s4 + $0x4] sm:$0xf]
  %v279 = vld [vmem:[%s4 + $0x8] sm:$0xf]
  %v280 = vld [vmem:[%s4 + $0xc] sm:$0xf]
  %v281 = vld [vmem:[%s4 + $0x10] sm:$0xf]
  %v282 = vld [vmem:[%s4 + $0x14] sm:$0xf]
  %v283 = vld [vmem:[%s4 + $0x18] sm:$0xf]
  %v284 = vld [vmem:[%s4 + $0x1c] sm:$0xf]
  %v293 = vunpack.c.l.b16 %v277
  %v294 = vunpack.c.l.b16 %v278
  %v295 = vunpack.c.l.b16 %v279
  %v296 = vunpack.c.l.b16 %v280
  %v297 = vunpack.c.l.b16 %v281
  %v298 = vunpack.c.l.b16 %v282
  %v299 = vunpack.c.l.b16 %v283
  %v300 = vunpack.c.l.b16 %v284
  %v301 = vpack.c.b16 %v294, %v293
  %v302 = vpack.c.b16 %v296, %v295
  %v303 = vpack.c.b16 %v298, %v297
  %v304 = vpack.c.b16 %v300, %v299
  %vm309 = vcmask 523264
  %v311 = vsel %vm309, 0, 0
  %313 = vmatpush.bf16.msra.mxu0 0
  %314 = vmatpush.bf16.msra.mxu0 0
  %315 = vmatpush.bf16.msra.mxu0 0
  %316 = vmatpush.bf16.msra.mxu0 0
  %317 = vmatpush.bf16.msra.mxu0 %v304
  %318 = vmatpush.bf16.msra.mxu0 %v303
  %319 = vmatpush.bf16.msra.mxu0 %v302
  %320 = vmatpush.bf16.msra.mxu0 %v301
  %321 = vmatmul.bf16.gmra.mxu0 %v311
  %v322 = vpop.f32.mrf.mxu0
  %v323 = vadd.f32 0.0, %v322
  %v324 = vpop.f32.mrf.mxu0
  %325 = vdwg.mxu0
  %v326 = vadd.f32 %v246, %v323
  %v327 = vtanh.pop %v326
  %v328 = vsel %vm269, %v327, 0.0
  %v329 = vpack.c.bf16 %v328, %v328
  %v331 = vsel %vm309, %v329, 0
  %333 = vmatpush.bf16.msra.mxu0 0
  %334 = vmatpush.bf16.msra.mxu0 0
  %335 = vmatpush.bf16.msra.mxu0 0
  %336 = vmatpush.bf16.msra.mxu0 0
  %337 = vmatpush.bf16.msra.mxu0 %v304
  %338 = vmatpush.bf16.msra.mxu0 %v303
  %339 = vmatpush.bf16.msra.mxu0 %v302
  %340 = vmatpush.bf16.msra.mxu0 %v301
  %341 = vmatmul.bf16.gmra.mxu0 %v331
  %v342 = vpop.f32.mrf.mxu0
  %v343 = vadd.f32 0.0, %v342
  %v344 = vpop.f32.mrf.mxu0
  %345 = vdwg.mxu0
  %v346 = vadd.f32 %v248, %v343
  %v347 = vtanh.pop %v346
  %v348 = vsel %vm270, %v347, %v328
  %v349 = vpack.c.bf16 %v348, %v348
  %v351 = vsel %vm309, %v349, 0
  %353 = vmatpush.bf16.msra.mxu0 0
  %354 = vmatpush.bf16.msra.mxu0 0
  %355 = vmatpush.bf16.msra.mxu0 0
  %356 = vmatpush.bf16.msra.mxu0 0
  %357 = vmatpush.bf16.msra.mxu0 %v304
  %358 = vmatpush.bf16.msra.mxu0 %v303
  %359 = vmatpush.bf16.msra.mxu0 %v302
  %360 = vmatpush.bf16.msra.mxu0 %v301
  %361 = vmatmul.bf16.gmra.mxu0 %v351
  %v362 = vpop.f32.mrf.mxu0
  %v363 = vadd.f32 0.0, %v362
  %v364 = vpop.f32.mrf.mxu0
  %365 = vdwg.mxu0
  %v366 = vadd.f32 %v251, %v363
  %v367 = vtanh.pop %v366
  %v368 = vsel %vm271, %v367, %v348
  %v369 = vpack.c.bf16 %v368, %v368
  %v371 = vsel %vm309, %v369, 0
  %373 = vmatpush.bf16.msra.mxu0 0
  %374 = vmatpush.bf16.msra.mxu0 0
  %375 = vmatpush.bf16.msra.mxu0 0
  %376 = vmatpush.bf16.msra.mxu0 0
  %377 = vmatpush.bf16.msra.mxu0 %v304
  %378 = vmatpush.bf16.msra.mxu0 %v303
  %379 = vmatpush.bf16.msra.mxu0 %v302
  %380 = vmatpush.bf16.msra.mxu0 %v301
  %381 = vmatmul.bf16.gmra.mxu0 %v371
  %v382 = vpop.f32.mrf.mxu0
  %v383 = vadd.f32 0.0, %v382
  %v384 = vpop.f32.mrf.mxu0
  %385 = vdwg.mxu0
  %v386 = vadd.f32 %v253, %v383
  %v387 = vtanh.pop %v386
  %v388 = vsel %vm272, %v387, %v368
  %v389 = vpack.c.bf16 %v388, %v388
  %v391 = vsel %vm309, %v389, 0
  %393 = vmatpush.bf16.msra.mxu0 0
  %394 = vmatpush.bf16.msra.mxu0 0
  %395 = vmatpush.bf16.msra.mxu0 0
  %396 = vmatpush.bf16.msra.mxu0 0
  %397 = vmatpush.bf16.msra.mxu0 %v304
  %398 = vmatpush.bf16.msra.mxu0 %v303
  %399 = vmatpush.bf16.msra.mxu0 %v302
  %400 = vmatpush.bf16.msra.mxu0 %v301
  %401 = vmatmul.bf16.gmra.mxu0 %v391
  %v402 = vpop.f32.mrf.mxu0
  %v403 = vadd.f32 0.0, %v402
  %v404 = vpop.f32.mrf.mxu0
  %405 = vdwg.mxu0
  %v406 = vadd.f32 %v256, %v403
  %v407 = vtanh.pop %v406
  %v408 = vsel %vm273, %v407, %v388
  %v409 = vpack.c.bf16 %v408, %v408
  %v411 = vsel %vm309, %v409, 0
  %413 = vmatpush.bf16.msra.mxu0 0
  %414 = vmatpush.bf16.msra.mxu0 0
  %415 = vmatpush.bf16.msra.mxu0 0
  %416 = vmatpush.bf16.msra.mxu0 0
  %417 = vmatpush.bf16.msra.mxu0 %v304
  %418 = vmatpush.bf16.msra.mxu0 %v303
  %419 = vmatpush.bf16.msra.mxu0 %v302
  %420 = vmatpush.bf16.msra.mxu0 %v301
  %421 = vmatmul.bf16.gmra.mxu0 %v411
  %v422 = vpop.f32.mrf.mxu0
  %v423 = vadd.f32 0.0, %v422
  %v424 = vpop.f32.mrf.mxu0
  %425 = vdwg.mxu0
  %v426 = vadd.f32 %v258, %v423
  %v427 = vtanh.pop %v426
  %v428 = vsel %vm274, %v427, %v408
  %v429 = vpack.c.bf16 %v428, %v428
  %v431 = vsel %vm309, %v429, 0
  %433 = vmatpush.bf16.msra.mxu0 0
  %434 = vmatpush.bf16.msra.mxu0 0
  %435 = vmatpush.bf16.msra.mxu0 0
  %436 = vmatpush.bf16.msra.mxu0 0
  %437 = vmatpush.bf16.msra.mxu0 %v304
  %438 = vmatpush.bf16.msra.mxu0 %v303
  %439 = vmatpush.bf16.msra.mxu0 %v302
  %440 = vmatpush.bf16.msra.mxu0 %v301
  %441 = vmatmul.bf16.gmra.mxu0 %v431
  %v442 = vpop.f32.mrf.mxu0
  %v443 = vadd.f32 0.0, %v442
  %v444 = vpop.f32.mrf.mxu0
  %445 = vdwg.mxu0
  %v446 = vadd.f32 %v261, %v443
  %v447 = vtanh.pop %v446
  %v448 = vsel %vm275, %v447, %v428
  %v449 = vpack.c.bf16 %v448, %v448
  %v451 = vsel %vm309, %v449, 0
  %453 = vmatpush.bf16.msra.mxu0 0
  %454 = vmatpush.bf16.msra.mxu0 0
  %455 = vmatpush.bf16.msra.mxu0 0
  %456 = vmatpush.bf16.msra.mxu0 0
  %457 = vmatpush.bf16.msra.mxu0 %v304
  %458 = vmatpush.bf16.msra.mxu0 %v303
  %459 = vmatpush.bf16.msra.mxu0 %v302
  %460 = vmatpush.bf16.msra.mxu0 %v301
  %461 = vmatmul.bf16.gmra.mxu0 %v451
  %v462 = vpop.f32.mrf.mxu0
  %v463 = vadd.f32 0.0, %v462
  %v464 = vpop.f32.mrf.mxu0
  %465 = vdwg.mxu0
  %v466 = vadd.f32 %v263, %v463
  %v467 = vtanh.pop %v466
  %v468 = vsel %vm276, %v467, %v448
  %v469 = vld [vmem:[%s5] sm:$0xff]
  %v470 = vld [vmem:[%s5 + $0x8] sm:$0xff]
  %v471 = vld [vmem:[%s5 + $0x10] sm:$0xff]
  %v472 = vld [vmem:[%s5 + $0x18] sm:$0xff]
  %v473 = vld [vmem:[%s5 + $0x20] sm:$0xff]
  %v474 = vld [vmem:[%s5 + $0x28] sm:$0xff]
  %v475 = vld [vmem:[%s5 + $0x30] sm:$0xff]
  %v476 = vld [vmem:[%s5 + $0x38] sm:$0xff]
  %v477 = vld [vmem:[%s6] sm:$0x1]
  %v479 = vperm.slane %v477, 0
  %v482 = vsel %vm309, %v468, 0
  %484 = vmatpush.msra.mxu0 0.0
  %485 = vmatpush.msra.mxu0 0.0
  %486 = vmatpush.msra.mxu0 0.0
  %487 = vmatpush.msra.mxu0 0.0
  %488 = vmatpush.msra.mxu0 0.0
  %489 = vmatpush.msra.mxu0 0.0
  %490 = vmatpush.msra.mxu0 0.0
  %491 = vmatpush.msra.mxu0 0.0
  %492 = vmatpush.msra.mxu0 %v476
  %493 = vmatpush.msra.mxu0 %v475
  %494 = vmatpush.msra.mxu0 %v474
  %495 = vmatpush.msra.mxu0 %v473
  %496 = vmatpush.msra.mxu0 %v472
  %497 = vmatpush.msra.mxu0 %v471
  %498 = vmatpush.msra.mxu0 %v470
  %499 = vmatpush.msra.mxu0 %v469
  %500 = vmatmul.f32.gmra.mxu0 %v482
  %v501 = vpop.f32.mrf.mxu0
  %v502 = vadd.f32 %v479, %v501
  %503 = vdwg.mxu0
  %vm504 = vcmask 15360
  %v505 = vsel %vm504, %v502, -inf
  %506 = vmax.xlane.f32.xlu0 %v505
  %v507 = vpop.xlane.xlu0 %506
  %v508 = vsub.f32 %v502, %v507
  %v509 = vmul.f32 %v508, 1.442695
  %v510 = vpow.pop %v509
  %v511 = vsel %vm504, %v510, 0.0
  %512 = vadd.xlane.f32.xlu0 %v511
  %v513 = vpop.xlane.xlu0 %512
  %v514 = vlog2.pop %v513
  %v515 = vmul.f32 %v514, 0.6931472
  %v516 = vadd.f32 %v515, %v507
  %v517 = vsub.f32 %v502, %v516
  %518 = vst.msk [vmem:[%s7] sm:$0xff] %vm504, %v517
  // Predicated region
  $region30: #{tpu_custom_call.1} parent=0 // pred_check
    _
  $region31: #{tpu_custom_call.1} parent=0 // pred_check_branch
    %520 = sbr.rel (0) target = $region33
  $region32: #{tpu_custom_call.1} parent=0 // pred_region
    _
  $region33: #{tpu_custom_call.1} parent=0 // pred_fallthru
    _
  // Predicated region
  $region34: #{tpu_custom_call.1} parent=0 // pred_check
    _
  $region35: #{tpu_custom_call.1} parent=0 // pred_check_branch
    %522 = sbr.rel (0) target = $region37
  $region36: #{tpu_custom_call.1} parent=0 // pred_region
    _
  $region37: #{tpu_custom_call.1} parent=0 // pred_fallthru
    _

</llo_original>
